<compile_context>
chip_gen: v7x
topology: tpu7x:2x2x1
jax: 0.10.0
libtpu: 0.0.40
codegen_flags: <defaults>
</compile_context>

<pallas_src>
import functools

import jax
import jax.numpy as jnp
from jax.experimental import pallas as pl
from jax.experimental.pallas import tpu as pltpu


# -----------------------------------------------------------------------------
# Pallas kernel: depthwise taps on the VPU + one pointwise MXU matmul
# -----------------------------------------------------------------------------
def _dsc_kernel(x_ref, dw_ref, dwb_ref, pw_ref, pwb_ref, o_ref, *, K):
    # x_ref  : (1, Hp, Wp, Cin)   reflect-padded image (resident across row tiles)
    # dw_ref : (K*K, 1, Cin)      depthwise taps, kh-major, f32
    # dwb_ref: (1, Cin)           depthwise bias, f32
    # pw_ref : (Cin, Cout)        pointwise weight, matmul dtype (bf16 or f32)
    # pwb_ref: (1, Cout)          pointwise bias, f32
    # o_ref  : (1, TH, Wo, Cout)  output row tile, f32
    _, TH, Wo, Cout = o_ref.shape
    Cin = x_ref.shape[-1]
    r0 = pl.multiple_of(pl.program_id(1) * TH, TH)

    # Depthwise conv: K*K VPU FMAs into a single f32 accumulator
    # (no im2col patch tensor, no extra vector-store passes).
    acc = jnp.zeros((TH, Wo, Cin), jnp.float32)
    for kh in range(K):
        for kw in range(K):
            win = x_ref[0, pl.ds(r0 + kh, TH), kw:kw + Wo, :]      # (TH, Wo, Cin)
            acc = acc + win.astype(jnp.float32) * dw_ref[kh * K + kw]
    d = acc + dwb_ref[...]                                          # (TH, Wo, Cin)

    # Pointwise conv: one MXU matmul, f32 accumulation.
    d2 = d.reshape(TH * Wo, Cin).astype(pw_ref.dtype)               # sublane-aligned reshape
    y = jnp.dot(d2, pw_ref[...], preferred_element_type=jnp.float32)
    y = y + pwb_ref[...]
    o_ref[...] = y.reshape(1, TH, Wo, Cout).astype(o_ref.dtype)


def _pick_row_tile(ho, target):
    # Largest divisor of Ho that is <= target (keeps the last tile full-size).
    for cand in range(min(target, ho), 0, -1):
        if ho % cand == 0:
            return cand
    return ho


# -----------------------------------------------------------------------------
# Wrapper: PyTorch-layout parameters -> kernel layout -> pallas_call
# -----------------------------------------------------------------------------
def depthwise_separable_conv2d(x_nchw, dw_w, dw_b, pw_w, pw_b, *, padding,
                               matmul_dtype=jnp.bfloat16, tile_rows=8):
    """Forward pass of DepthwiseSeparableConv2d.

    x_nchw : (N, Cin, H, W)      float32
    dw_w   : (Cin, 1, K, K)      depthwise Conv2d weight (PyTorch layout)
    dw_b   : (Cin,)              depthwise bias
    pw_w   : (Cout, Cin, 1, 1)   pointwise Conv2d weight
    pw_b   : (Cout,)             pointwise bias
    returns: (N, Cout, Ho, Wo)   float32
    """
    N, Cin, H, W = x_nchw.shape
    Cout = pw_w.shape[0]
    K = dw_w.shape[-1]
    p = padding
    assert p < H and p < W, "reflect padding requires padding < spatial size"
    Ho, Wo = H + 2 * p - K + 1, W + 2 * p - K + 1
    Hp, Wp = H + 2 * p, W + 2 * p

    # NCHW -> NHWC (channels on the lane axis) + cast, host reflect pad.
    x = jnp.transpose(x_nchw, (0, 2, 3, 1)).astype(matmul_dtype)
    x = jnp.pad(x, ((0, 0), (p, p), (p, p), (0, 0)), mode="reflect")

    # Depthwise taps (kh-major) and pointwise weight in kernel layout.
    dw = jnp.transpose(dw_w[:, 0, :, :], (1, 2, 0)).astype(jnp.float32)   # (K, K, Cin)
    dw = dw.reshape(K * K, 1, Cin)
    dwb = dw_b.reshape(1, Cin).astype(jnp.float32)
    pw = jnp.transpose(pw_w[:, :, 0, 0], (1, 0)).astype(matmul_dtype)     # (Cin, Cout)
    pwb = pw_b.reshape(1, Cout).astype(jnp.float32)

    TH = _pick_row_tile(Ho, tile_rows)
    Hc = Ho // TH

    kernel = functools.partial(_dsc_kernel, K=K)
    out = pl.pallas_call(
        kernel,
        out_shape=jax.ShapeDtypeStruct((N, Ho, Wo, Cout), jnp.float32),
        grid=(N, Hc),
        in_specs=[
            # Whole padded image per batch; block index constant across the
            # row-tile axis so it is fetched once per image.
            pl.BlockSpec((1, Hp, Wp, Cin), lambda n, h: (n, 0, 0, 0)),
            # Grid-invariant weights / biases.
            pl.BlockSpec((K * K, 1, Cin), lambda n, h: (0, 0, 0)),
            pl.BlockSpec((1, Cin), lambda n, h: (0, 0)),
            pl.BlockSpec((Cin, Cout), lambda n, h: (0, 0)),
            pl.BlockSpec((1, Cout), lambda n, h: (0, 0)),
        ],
        out_specs=pl.BlockSpec((1, TH, Wo, Cout), lambda n, h: (n, h, 0, 0)),
        compiler_params=pltpu.CompilerParams(
            dimension_semantics=("parallel", "parallel"),
            vmem_limit_bytes=48 * 1024 * 1024,
        ),
    )(x, dw, dwb, pw, pwb)

    return jnp.transpose(out, (0, 3, 1, 2))       # NHWC -> NCHW


# -----------------------------------------------------------------------------
# Pure-JAX reference (matches the PyTorch module semantics)
# -----------------------------------------------------------------------------
def _reference(x_nchw, dw_w, dw_b, pw_w, pw_b, padding):
    p = padding
    K = dw_w.shape[-1]
    xp = jnp.pad(x_nchw, ((0, 0), (0, 0), (p, p), (p, p)), mode="reflect")
    N, C, Hp, Wp = xp.shape
    Ho, Wo = Hp - K + 1, Wp - K + 1
    d = jnp.zeros((N, C, Ho, Wo), jnp.float32)
    for kh in range(K):
        for kw in range(K):
            d = d + xp[:, :, kh:kh + Ho, kw:kw + Wo] * \
                dw_w[None, :, 0, kh, kw, None, None]
    d = d + dw_b[None, :, None, None]
    out = jnp.einsum("nchw,oc->nohw", d, pw_w[:, :, 0, 0])
    return out + pw_b[None, :, None, None]


if __name__ == "__main__":
    key = jax.random.PRNGKey(0)
    kx, k1, k2, k3, k4 = jax.random.split(key, 5)

    N, Cin, H, W = 2, 4, 16, 16
    Cout, K, padding = 8, 3, 1

    x = jax.random.normal(kx, (N, Cin, H, W), jnp.float32)

    # PyTorch-style uniform init U(-1/sqrt(fan_in), 1/sqrt(fan_in))
    bound_dw = 1.0 / (1 * K * K) ** 0.5
    dw_w = jax.random.uniform(k1, (Cin, 1, K, K), jnp.float32, -bound_dw, bound_dw)
    dw_b = jax.random.uniform(k2, (Cin,), jnp.float32, -bound_dw, bound_dw)
    bound_pw = 1.0 / Cin ** 0.5
    pw_w = jax.random.uniform(k3, (Cout, Cin, 1, 1), jnp.float32, -bound_pw, bound_pw)
    pw_b = jax.random.uniform(k4, (Cout,), jnp.float32, -bound_pw, bound_pw)

    y_ref = _reference(x, dw_w, dw_b, pw_w, pw_b, padding)

    # 1) Bit-accurate f32 path: strict check of the forward semantics.
    fwd_f32 = jax.jit(functools.partial(depthwise_separable_conv2d,
                                        padding=padding, matmul_dtype=jnp.float32))
    y32 = jax.block_until_ready(fwd_f32(x, dw_w, dw_b, pw_w, pw_b))
    assert y32.shape == (N, Cout, H, W), y32.shape
    assert bool(jnp.all(jnp.isfinite(y32)))
    err32 = float(jnp.max(jnp.abs(y32 - y_ref)))
    assert err32 < 1e-3, f"f32 path max abs error {err32}"

    # 2) Default perf path: bf16 activations / MXU operands, f32 accumulation.
    fwd_bf16 = jax.jit(functools.partial(depthwise_separable_conv2d, padding=padding))
    y16 = jax.block_until_ready(fwd_bf16(x, dw_w, dw_b, pw_w, pw_b))
    assert y16.shape == (N, Cout, H, W), y16.shape
    assert bool(jnp.all(jnp.isfinite(y16)))
    err16 = float(jnp.max(jnp.abs(y16 - y_ref)))
    assert err16 < 1e-1, f"bf16 path max abs error {err16}"

    print("KERNEL_OK")
</pallas_src>

<mosaic_0001>
module attributes {stable_mosaic.version = 11 : i64} {
  func.func @_dsc_kernel(%arg0: i32, %arg1: i32, %arg2: memref<1x18x18x4xf32, #tpu.memory_space<vmem>>, %arg3: memref<9x1x4xf32, #tpu.memory_space<vmem>>, %arg4: memref<1x4xf32, #tpu.memory_space<vmem>>, %arg5: memref<4x8xf32, #tpu.memory_space<vmem>>, %arg6: memref<1x8xf32, #tpu.memory_space<vmem>>, %arg7: memref<1x8x16x8xf32, #tpu.memory_space<vmem>>) attributes {dimension_semantics = [#tpu.dimension_semantics<parallel>, #tpu.dimension_semantics<parallel>], iteration_bounds = array<i64: 2, 2>, scalar_prefetch = 0 : i64, scratch_operands = 0 : i64, tpu.core_type = #tpu.core_type<tc>, window_params = [{transform_indices = @transform_0, window_bounds = array<i64: 1, 18, 18, 4>}, {pipeline_mode = #tpu.pipeline_mode<synchronous>, transform_indices = @transform_1, window_bounds = array<i64: 9, 1, 4>}, {pipeline_mode = #tpu.pipeline_mode<synchronous>, transform_indices = @transform_2, window_bounds = array<i64: 1, 4>}, {pipeline_mode = #tpu.pipeline_mode<synchronous>, transform_indices = @transform_3, window_bounds = array<i64: 4, 8>}, {pipeline_mode = #tpu.pipeline_mode<synchronous>, transform_indices = @transform_4, window_bounds = array<i64: 1, 8>}, {transform_indices = @transform_5, window_bounds = array<i64: 1, 8, 16, 8>}]} {
    %c8_i32 = arith.constant 8 : i32
    %0 = arith.muli %arg1, %c8_i32 : i32
    %1 = tpu.assume_multiple %0, 8 : i32
    %cst = arith.constant 0.000000e+00 : f32
    %2 = vector.broadcast %cst : f32 to vector<8x16x4xf32>
    %c0_i32 = arith.constant 0 : i32
    %3 = arith.addi %1, %c0_i32 : i32
    %c0 = arith.constant 0 : index
    %4 = arith.index_cast %3 : i32 to index
    %c0_0 = arith.constant 0 : index
    %c0_1 = arith.constant 0 : index
    %5 = vector.load %arg2[%c0, %4, %c0_0, %c0_1] : memref<1x18x18x4xf32, #tpu.memory_space<vmem>>, vector<1x8x16x4xf32>
    %6 = vector.shape_cast %5 : vector<1x8x16x4xf32> to vector<8x16x4xf32>
    %c0_2 = arith.constant 0 : index
    %c0_3 = arith.constant 0 : index
    %c0_4 = arith.constant 0 : index
    %7 = vector.load %arg3[%c0_2, %c0_3, %c0_4] : memref<9x1x4xf32, #tpu.memory_space<vmem>>, vector<1x1x4xf32>
    %8 = vector.shape_cast %7 : vector<1x1x4xf32> to vector<1x4xf32>
    %9 = vector.shape_cast %8 : vector<1x4xf32> to vector<1x1x4xf32>
    %10 = vector.broadcast %9 : vector<1x1x4xf32> to vector<8x16x4xf32>
    %11 = arith.mulf %6, %10 : vector<8x16x4xf32>
    %12 = arith.addf %2, %11 : vector<8x16x4xf32>
    %c0_i32_5 = arith.constant 0 : i32
    %13 = arith.addi %1, %c0_i32_5 : i32
    %c0_6 = arith.constant 0 : index
    %14 = arith.index_cast %13 : i32 to index
    %c1 = arith.constant 1 : index
    %c0_7 = arith.constant 0 : index
    %15 = vector.load %arg2[%c0_6, %14, %c1, %c0_7] : memref<1x18x18x4xf32, #tpu.memory_space<vmem>>, vector<1x8x16x4xf32>
    %16 = vector.shape_cast %15 : vector<1x8x16x4xf32> to vector<8x16x4xf32>
    %c1_8 = arith.constant 1 : index
    %c0_9 = arith.constant 0 : index
    %c0_10 = arith.constant 0 : index
    %17 = vector.load %arg3[%c1_8, %c0_9, %c0_10] : memref<9x1x4xf32, #tpu.memory_space<vmem>>, vector<1x1x4xf32>
    %18 = vector.shape_cast %17 : vector<1x1x4xf32> to vector<1x4xf32>
    %19 = vector.shape_cast %18 : vector<1x4xf32> to vector<1x1x4xf32>
    %20 = vector.broadcast %19 : vector<1x1x4xf32> to vector<8x16x4xf32>
    %21 = arith.mulf %16, %20 : vector<8x16x4xf32>
    %22 = arith.addf %12, %21 : vector<8x16x4xf32>
    %c0_i32_11 = arith.constant 0 : i32
    %23 = arith.addi %1, %c0_i32_11 : i32
    %c0_12 = arith.constant 0 : index
    %24 = arith.index_cast %23 : i32 to index
    %c2 = arith.constant 2 : index
    %c0_13 = arith.constant 0 : index
    %25 = vector.load %arg2[%c0_12, %24, %c2, %c0_13] : memref<1x18x18x4xf32, #tpu.memory_space<vmem>>, vector<1x8x16x4xf32>
    %26 = vector.shape_cast %25 : vector<1x8x16x4xf32> to vector<8x16x4xf32>
    %c2_14 = arith.constant 2 : index
    %c0_15 = arith.constant 0 : index
    %c0_16 = arith.constant 0 : index
    %27 = vector.load %arg3[%c2_14, %c0_15, %c0_16] : memref<9x1x4xf32, #tpu.memory_space<vmem>>, vector<1x1x4xf32>
    %28 = vector.shape_cast %27 : vector<1x1x4xf32> to vector<1x4xf32>
    %29 = vector.shape_cast %28 : vector<1x4xf32> to vector<1x1x4xf32>
    %30 = vector.broadcast %29 : vector<1x1x4xf32> to vector<8x16x4xf32>
    %31 = arith.mulf %26, %30 : vector<8x16x4xf32>
    %32 = arith.addf %22, %31 : vector<8x16x4xf32>
    %c1_i32 = arith.constant 1 : i32
    %33 = arith.addi %1, %c1_i32 : i32
    %c0_17 = arith.constant 0 : index
    %34 = arith.index_cast %33 : i32 to index
    %c0_18 = arith.constant 0 : index
    %c0_19 = arith.constant 0 : index
    %35 = vector.load %arg2[%c0_17, %34, %c0_18, %c0_19] : memref<1x18x18x4xf32, #tpu.memory_space<vmem>>, vector<1x8x16x4xf32>
    %36 = vector.shape_cast %35 : vector<1x8x16x4xf32> to vector<8x16x4xf32>
    %c3 = arith.constant 3 : index
    %c0_20 = arith.constant 0 : index
    %c0_21 = arith.constant 0 : index
    %37 = vector.load %arg3[%c3, %c0_20, %c0_21] : memref<9x1x4xf32, #tpu.memory_space<vmem>>, vector<1x1x4xf32>
    %38 = vector.shape_cast %37 : vector<1x1x4xf32> to vector<1x4xf32>
    %39 = vector.shape_cast %38 : vector<1x4xf32> to vector<1x1x4xf32>
    %40 = vector.broadcast %39 : vector<1x1x4xf32> to vector<8x16x4xf32>
    %41 = arith.mulf %36, %40 : vector<8x16x4xf32>
    %42 = arith.addf %32, %41 : vector<8x16x4xf32>
    %c1_i32_22 = arith.constant 1 : i32
    %43 = arith.addi %1, %c1_i32_22 : i32
    %c0_23 = arith.constant 0 : index
    %44 = arith.index_cast %43 : i32 to index
    %c1_24 = arith.constant 1 : index
    %c0_25 = arith.constant 0 : index
    %45 = vector.load %arg2[%c0_23, %44, %c1_24, %c0_25] : memref<1x18x18x4xf32, #tpu.memory_space<vmem>>, vector<1x8x16x4xf32>
    %46 = vector.shape_cast %45 : vector<1x8x16x4xf32> to vector<8x16x4xf32>
    %c4 = arith.constant 4 : index
    %c0_26 = arith.constant 0 : index
    %c0_27 = arith.constant 0 : index
    %47 = vector.load %arg3[%c4, %c0_26, %c0_27] : memref<9x1x4xf32, #tpu.memory_space<vmem>>, vector<1x1x4xf32>
    %48 = vector.shape_cast %47 : vector<1x1x4xf32> to vector<1x4xf32>
    %49 = vector.shape_cast %48 : vector<1x4xf32> to vector<1x1x4xf32>
    %50 = vector.broadcast %49 : vector<1x1x4xf32> to vector<8x16x4xf32>
    %51 = arith.mulf %46, %50 : vector<8x16x4xf32>
    %52 = arith.addf %42, %51 : vector<8x16x4xf32>
    %c1_i32_28 = arith.constant 1 : i32
    %53 = arith.addi %1, %c1_i32_28 : i32
    %c0_29 = arith.constant 0 : index
    %54 = arith.index_cast %53 : i32 to index
    %c2_30 = arith.constant 2 : index
    %c0_31 = arith.constant 0 : index
    %55 = vector.load %arg2[%c0_29, %54, %c2_30, %c0_31] : memref<1x18x18x4xf32, #tpu.memory_space<vmem>>, vector<1x8x16x4xf32>
    %56 = vector.shape_cast %55 : vector<1x8x16x4xf32> to vector<8x16x4xf32>
    %c5 = arith.constant 5 : index
    %c0_32 = arith.constant 0 : index
    %c0_33 = arith.constant 0 : index
    %57 = vector.load %arg3[%c5, %c0_32, %c0_33] : memref<9x1x4xf32, #tpu.memory_space<vmem>>, vector<1x1x4xf32>
    %58 = vector.shape_cast %57 : vector<1x1x4xf32> to vector<1x4xf32>
    %59 = vector.shape_cast %58 : vector<1x4xf32> to vector<1x1x4xf32>
    %60 = vector.broadcast %59 : vector<1x1x4xf32> to vector<8x16x4xf32>
    %61 = arith.mulf %56, %60 : vector<8x16x4xf32>
    %62 = arith.addf %52, %61 : vector<8x16x4xf32>
    %c2_i32 = arith.constant 2 : i32
    %63 = arith.addi %1, %c2_i32 : i32
    %c0_34 = arith.constant 0 : index
    %64 = arith.index_cast %63 : i32 to index
    %c0_35 = arith.constant 0 : index
    %c0_36 = arith.constant 0 : index
    %65 = vector.load %arg2[%c0_34, %64, %c0_35, %c0_36] : memref<1x18x18x4xf32, #tpu.memory_space<vmem>>, vector<1x8x16x4xf32>
    %66 = vector.shape_cast %65 : vector<1x8x16x4xf32> to vector<8x16x4xf32>
    %c6 = arith.constant 6 : index
    %c0_37 = arith.constant 0 : index
    %c0_38 = arith.constant 0 : index
    %67 = vector.load %arg3[%c6, %c0_37, %c0_38] : memref<9x1x4xf32, #tpu.memory_space<vmem>>, vector<1x1x4xf32>
    %68 = vector.shape_cast %67 : vector<1x1x4xf32> to vector<1x4xf32>
    %69 = vector.shape_cast %68 : vector<1x4xf32> to vector<1x1x4xf32>
    %70 = vector.broadcast %69 : vector<1x1x4xf32> to vector<8x16x4xf32>
    %71 = arith.mulf %66, %70 : vector<8x16x4xf32>
    %72 = arith.addf %62, %71 : vector<8x16x4xf32>
    %c2_i32_39 = arith.constant 2 : i32
    %73 = arith.addi %1, %c2_i32_39 : i32
    %c0_40 = arith.constant 0 : index
    %74 = arith.index_cast %73 : i32 to index
    %c1_41 = arith.constant 1 : index
    %c0_42 = arith.constant 0 : index
    %75 = vector.load %arg2[%c0_40, %74, %c1_41, %c0_42] : memref<1x18x18x4xf32, #tpu.memory_space<vmem>>, vector<1x8x16x4xf32>
    %76 = vector.shape_cast %75 : vector<1x8x16x4xf32> to vector<8x16x4xf32>
    %c7 = arith.constant 7 : index
    %c0_43 = arith.constant 0 : index
    %c0_44 = arith.constant 0 : index
    %77 = vector.load %arg3[%c7, %c0_43, %c0_44] : memref<9x1x4xf32, #tpu.memory_space<vmem>>, vector<1x1x4xf32>
    %78 = vector.shape_cast %77 : vector<1x1x4xf32> to vector<1x4xf32>
    %79 = vector.shape_cast %78 : vector<1x4xf32> to vector<1x1x4xf32>
    %80 = vector.broadcast %79 : vector<1x1x4xf32> to vector<8x16x4xf32>
    %81 = arith.mulf %76, %80 : vector<8x16x4xf32>
    %82 = arith.addf %72, %81 : vector<8x16x4xf32>
    %c2_i32_45 = arith.constant 2 : i32
    %83 = arith.addi %1, %c2_i32_45 : i32
    %c0_46 = arith.constant 0 : index
    %84 = arith.index_cast %83 : i32 to index
    %c2_47 = arith.constant 2 : index
    %c0_48 = arith.constant 0 : index
    %85 = vector.load %arg2[%c0_46, %84, %c2_47, %c0_48] : memref<1x18x18x4xf32, #tpu.memory_space<vmem>>, vector<1x8x16x4xf32>
    %86 = vector.shape_cast %85 : vector<1x8x16x4xf32> to vector<8x16x4xf32>
    %c8 = arith.constant 8 : index
    %c0_49 = arith.constant 0 : index
    %c0_50 = arith.constant 0 : index
    %87 = vector.load %arg3[%c8, %c0_49, %c0_50] : memref<9x1x4xf32, #tpu.memory_space<vmem>>, vector<1x1x4xf32>
    %88 = vector.shape_cast %87 : vector<1x1x4xf32> to vector<1x4xf32>
    %89 = vector.shape_cast %88 : vector<1x4xf32> to vector<1x1x4xf32>
    %90 = vector.broadcast %89 : vector<1x1x4xf32> to vector<8x16x4xf32>
    %91 = arith.mulf %86, %90 : vector<8x16x4xf32>
    %92 = arith.addf %82, %91 : vector<8x16x4xf32>
    %c0_51 = arith.constant 0 : index
    %c0_52 = arith.constant 0 : index
    %93 = vector.load %arg4[%c0_51, %c0_52] : memref<1x4xf32, #tpu.memory_space<vmem>>, vector<1x4xf32>
    %94 = vector.shape_cast %93 : vector<1x4xf32> to vector<1x1x4xf32>
    %95 = vector.broadcast %94 : vector<1x1x4xf32> to vector<8x16x4xf32>
    %96 = arith.addf %92, %95 : vector<8x16x4xf32>
    %97 = vector.shape_cast %96 : vector<8x16x4xf32> to vector<128x4xf32>
    %c0_53 = arith.constant 0 : index
    %c0_54 = arith.constant 0 : index
    %98 = vector.load %arg5[%c0_53, %c0_54] : memref<4x8xf32, #tpu.memory_space<vmem>>, vector<4x8xf32>
    %cst_55 = arith.constant dense<0.000000e+00> : vector<128x8xf32>
    %99 = tpu.matmul %97, %98, %cst_55 {dimension_numbers = #tpu.dot_dimension_numbers<[1], [0], [0], [1], [0, 0, 1, 1], [], []>} : vector<128x4xf32>, vector<4x8xf32>, vector<128x8xf32> -> vector<128x8xf32>
    %c0_56 = arith.constant 0 : index
    %c0_57 = arith.constant 0 : index
    %100 = vector.load %arg6[%c0_56, %c0_57] : memref<1x8xf32, #tpu.memory_space<vmem>>, vector<1x8xf32>
    %101 = vector.broadcast %100 : vector<1x8xf32> to vector<128x8xf32>
    %102 = arith.addf %99, %101 : vector<128x8xf32>
    %103 = vector.shape_cast %102 : vector<128x8xf32> to vector<1x8x16x8xf32>
    %c0_58 = arith.constant 0 : index
    %c0_59 = arith.constant 0 : index
    %c0_60 = arith.constant 0 : index
    %c0_61 = arith.constant 0 : index
    %104 = vector.load %arg7[%c0_58, %c0_59, %c0_60, %c0_61] : memref<1x8x16x8xf32, #tpu.memory_space<vmem>>, vector<1x8x16x8xf32>
    tpu.vector_store %arg7[%c0_58, %c0_59, %c0_60, %c0_61], %103 {strides = array<i32>} : memref<1x8x16x8xf32, #tpu.memory_space<vmem>>, vector<1x8x16x8xf32>,
    return
  }
  func.func @transform_0(%arg0: i32, %arg1: i32) -> (i32, i32, i32, i32) {
    %c0_i32 = arith.constant 0 : i32
    %c0_i32_0 = arith.constant 0 : i32
    %c0_i32_1 = arith.constant 0 : i32
    %c0_i32_2 = arith.constant 0 : i32
    return %arg0, %c0_i32, %c0_i32_0, %c0_i32_1 : i32, i32, i32, i32
  }
  func.func @transform_1(%arg0: i32, %arg1: i32) -> (i32, i32, i32) {
    %c0_i32 = arith.constant 0 : i32
    %c0_i32_0 = arith.constant 0 : i32
    %c0_i32_1 = arith.constant 0 : i32
    %c0_i32_2 = arith.constant 0 : i32
    return %c0_i32, %c0_i32_0, %c0_i32_1 : i32, i32, i32
  }
  func.func @transform_2(%arg0: i32, %arg1: i32) -> (i32, i32) {
    %c0_i32 = arith.constant 0 : i32
    %c0_i32_0 = arith.constant 0 : i32
    %c0_i32_1 = arith.constant 0 : i32
    return %c0_i32, %c0_i32_0 : i32, i32
  }
  func.func @transform_3(%arg0: i32, %arg1: i32) -> (i32, i32) {
    %c0_i32 = arith.constant 0 : i32
    %c0_i32_0 = arith.constant 0 : i32
    %c0_i32_1 = arith.constant 0 : i32
    return %c0_i32, %c0_i32_0 : i32, i32
  }
  func.func @transform_4(%arg0: i32, %arg1: i32) -> (i32, i32) {
    %c0_i32 = arith.constant 0 : i32
    %c0_i32_0 = arith.constant 0 : i32
    %c0_i32_1 = arith.constant 0 : i32
    return %c0_i32, %c0_i32_0 : i32, i32
  }
  func.func @transform_5(%arg0: i32, %arg1: i32) -> (i32, i32, i32, i32) {
    %c0_i32 = arith.constant 0 : i32
    %c0_i32_0 = arith.constant 0 : i32
    %c0_i32_1 = arith.constant 0 : i32
    return %arg0, %arg1, %c0_i32, %c0_i32_0 : i32, i32, i32, i32
  }
}

</mosaic_0001>

<llo_original>
// kernel: depthwise_separable_conv2d.1
$region0: #{depthwise_separable_conv2d.1}
  #allocation0 [shape = 'u32[]', space=smem, size = 0x4, offset = 0x4, fixed_abs, tag = 'smem constant byte address 0x4 - core index']
  #allocation1 [shape = 'u32[144,128]{1,0:T(1,128)}', space=vmem, size = 0x12000, scoped, tag = 'internal scratch']
  %s0 = inlined_call_operand.vmem [shape: f32[2,18,18,4], index: 0, kind: input, shape index: {}]
  %s1 = inlined_call_operand.vmem [shape: f32[9,1,4], index: 1, kind: input, shape index: {}]
  %s2 = inlined_call_operand.vmem [shape: f32[1,4], index: 2, kind: input, shape index: {}]
  %s3 = inlined_call_operand.vmem [shape: f32[4,8], index: 3, kind: input, shape index: {}]
  %s4 = inlined_call_operand.vmem [shape: f32[1,8], index: 4, kind: input, shape index: {}]
  %s5 = inlined_call_operand.vmem [shape: f32[2,16,16,8], index: 5, kind: output, shape index: {}]
  %s6 = sld [smem:[#allocation0]]
  $region53: #{depthwise_separable_conv2d.1} parent=0
    _
  %s8 = ssub.s32 1, %s6
  %s9 = scalar_select 0, %s8, %s6
  loop: start=0, step=1, limit=6
  $region2: #{depthwise_separable_conv2d.1} parent=0 // loop_pre_header
    _
  $region3: #{depthwise_separable_conv2d.1} parent=0 // loop_header
    %s11 = sphi 0, %s15
    %p12 = scmp.ge.s32.totalorder %s11, 6
    %s18 = sphi 0, %s30
    %s19 = sphi 0, %s26
    %s20 = sphi 0, %s18
    %s21 = sphi 0, %s19
    %s22 = sphi 0, %s20
    %s23 = sphi 0, %s21
    %s33 = sphi 0, %s35
    %s36 = sphi 0, %s33
    %s37 = sphi 0, %s36
    %s53 = sphi 0, %s37
    %s57 = sphi 0, %s57
    %s59 = sphi 0, %s57
    %s60 = sphi 0, %s59
    %s74 = sphi 0, %s60
    %s78 = sphi 0, %s78
    %s80 = sphi 0, %s78
    %s81 = sphi 0, %s80
    %s95 = sphi 0, %s81
    %s99 = sphi 0, %s99
    %s101 = sphi 0, %s99
    %s102 = sphi 0, %s101
    %s116 = sphi 0, %s102
    %s120 = sphi 0, %s120
    %s122 = sphi 0, %s120
    %s123 = sphi 0, %s122
    %s137 = sphi 0, %s123
    %s145 = sphi 0, %s147
    %s148 = sphi 0, %s145
    %s149 = sphi 0, %s148
    %s165 = sphi 0, %s149
  $region4: #{depthwise_separable_conv2d.1} parent=0 // loop_header_branch
    %14 = sbr.rel (%p12) target = $region8
  $region5: #{depthwise_separable_conv2d.1} parent=0 // loop_body
    %s16 = ssub.s32 %s11, 1
    %s17 = ssub.s32 %s11, 2
    %s24 = sadd.s32 1, %s19
    %p25 = scmp.ge.s32.totalorder %s24, 2
    %s26 = scalar_select %p25, 0, %s24
    %s27 = sadd.s32 1, %s18
    %s28 = scalar_select %p25, %s27, %s18
    %p29 = scmp.ge.s32.totalorder %s28, 2
    %s30 = scalar_select %p29, 0, %s28
    %s31 = ssub.s32 %s18, %s30
    %p32 = scmp.eq.s32.totalorder %s31, 0
    %s34 = sadd.s32 %s33, 1
    %s35 = scalar_select %p32, %s33, %s34
    %p38 = pneg %p32
    %p39 = scmp.eq.s32.totalorder %s11, 3
    %p40 = por %p38, %p39
    %p41 = scmp.ne.s32.totalorder %s33, %s36
    %p42 = scmp.eq.s32.totalorder %s11, 0
    %p43 = por %p41, %p42
    %p44 = scmp.ne.s32.totalorder %s33, %s36
    %p45 = scmp.eq.s32.totalorder %s16, 3
    %p46 = por %p44, %p45
    %p47 = scmp.ne.s32.totalorder %s36, %s37
    %p48 = scmp.eq.s32.totalorder %s16, 0
    %p49 = por %p47, %p48
    %p50 = scmp.ne.s32.totalorder %s36, %s37
    %p51 = scmp.eq.s32.totalorder %s17, 3
    %p52 = por %p50, %p51
    %p54 = scmp.ne.s32.totalorder %s37, %s53
    %p55 = scmp.eq.s32.totalorder %s17, 0
    %p56 = por %p54, %p55
    %s58 = sadd.s32 %s57, 1
    %p61 = scmp.eq.s32.totalorder %s11, 3
    %p62 = scmp.ne.s32.totalorder %s57, %s59
    %p63 = scmp.eq.s32.totalorder %s11, 0
    %p64 = por %p62, %p63
    %p65 = scmp.ne.s32.totalorder %s57, %s59
    %p66 = scmp.eq.s32.totalorder %s16, 3
    %p67 = por %p65, %p66
    %p68 = scmp.ne.s32.totalorder %s59, %s60
    %p69 = scmp.eq.s32.totalorder %s16, 0
    %p70 = por %p68, %p69
    %p71 = scmp.ne.s32.totalorder %s59, %s60
    %p72 = scmp.eq.s32.totalorder %s17, 3
    %p73 = por %p71, %p72
    %p75 = scmp.ne.s32.totalorder %s60, %s74
    %p76 = scmp.eq.s32.totalorder %s17, 0
    %p77 = por %p75, %p76
    %s79 = sadd.s32 %s78, 1
    %p82 = scmp.eq.s32.totalorder %s11, 3
    %p83 = scmp.ne.s32.totalorder %s78, %s80
    %p84 = scmp.eq.s32.totalorder %s11, 0
    %p85 = por %p83, %p84
    %p86 = scmp.ne.s32.totalorder %s78, %s80
    %p87 = scmp.eq.s32.totalorder %s16, 3
    %p88 = por %p86, %p87
    %p89 = scmp.ne.s32.totalorder %s80, %s81
    %p90 = scmp.eq.s32.totalorder %s16, 0
    %p91 = por %p89, %p90
    %p92 = scmp.ne.s32.totalorder %s80, %s81
    %p93 = scmp.eq.s32.totalorder %s17, 3
    %p94 = por %p92, %p93
    %p96 = scmp.ne.s32.totalorder %s81, %s95
    %p97 = scmp.eq.s32.totalorder %s17, 0
    %p98 = por %p96, %p97
    %s100 = sadd.s32 %s99, 1
    %p103 = scmp.eq.s32.totalorder %s11, 3
    %p104 = scmp.ne.s32.totalorder %s99, %s101
    %p105 = scmp.eq.s32.totalorder %s11, 0
    %p106 = por %p104, %p105
    %p107 = scmp.ne.s32.totalorder %s99, %s101
    %p108 = scmp.eq.s32.totalorder %s16, 3
    %p109 = por %p107, %p108
    %p110 = scmp.ne.s32.totalorder %s101, %s102
    %p111 = scmp.eq.s32.totalorder %s16, 0
    %p112 = por %p110, %p111
    %p113 = scmp.ne.s32.totalorder %s101, %s102
    %p114 = scmp.eq.s32.totalorder %s17, 3
    %p115 = por %p113, %p114
    %p117 = scmp.ne.s32.totalorder %s102, %s116
    %p118 = scmp.eq.s32.totalorder %s17, 0
    %p119 = por %p117, %p118
    %s121 = sadd.s32 %s120, 1
    %p124 = scmp.eq.s32.totalorder %s11, 3
    %p125 = scmp.ne.s32.totalorder %s120, %s122
    %p126 = scmp.eq.s32.totalorder %s11, 0
    %p127 = por %p125, %p126
    %p128 = scmp.ne.s32.totalorder %s120, %s122
    %p129 = scmp.eq.s32.totalorder %s16, 3
    %p130 = por %p128, %p129
    %p131 = scmp.ne.s32.totalorder %s122, %s123
    %p132 = scmp.eq.s32.totalorder %s16, 0
    %p133 = por %p131, %p132
    %p134 = scmp.ne.s32.totalorder %s122, %s123
    %p135 = scmp.eq.s32.totalorder %s17, 3
    %p136 = por %p134, %p135
    %p138 = scmp.ne.s32.totalorder %s123, %s137
    %p139 = scmp.eq.s32.totalorder %s17, 0
    %p140 = por %p138, %p139
    %s141 = ssub.s32 %s18, %s30
    %s142 = ssub.s32 %s19, %s26
    %s143 = sor.u32 %s141, %s142
    %p144 = scmp.eq.s32.totalorder %s143, 0
    %s146 = sadd.s32 %s145, 1
    %s147 = scalar_select %p144, %s145, %s146
    %p150 = pneg %p144
    %p151 = scmp.eq.s32.totalorder %s11, 3
    %p152 = por %p150, %p151
    %p153 = scmp.ne.s32.totalorder %s145, %s148
    %p154 = scmp.eq.s32.totalorder %s11, 0
    %p155 = por %p153, %p154
    %p156 = scmp.ne.s32.totalorder %s145, %s148
    %p157 = scmp.eq.s32.totalorder %s16, 3
    %p158 = por %p156, %p157
    %p159 = scmp.ne.s32.totalorder %s148, %s149
    %p160 = scmp.eq.s32.totalorder %s16, 0
    %p161 = por %p159, %p160
    %p162 = scmp.ne.s32.totalorder %s148, %s149
    %p163 = scmp.eq.s32.totalorder %s17, 3
    %p164 = por %p162, %p163
    %p166 = scmp.ne.s32.totalorder %s149, %s165
    %p167 = scmp.eq.s32.totalorder %s17, 0
    %p168 = por %p166, %p167
    %p169 = scmp.le.s32.totalorder 1, %s11
    %p170 = scmp.lt.s32.totalorder %s11, 5
    %p171 = pnand %p169, %p170
    %p172 = pneg %p171
    // Predicated region
    $region9: #{depthwise_separable_conv2d.1} parent=5 // pred_check
      _
    $region10: #{depthwise_separable_conv2d.1} parent=5 // pred_check_branch
      %174 = sbr.rel (%p171) target = $region12
    $region11: #{depthwise_separable_conv2d.1} parent=5 // pred_region
      %s175 = ssub.s32 %s11, 1
      // Predicated region
      $region13: #{depthwise_separable_conv2d.1} parent=11 // pred_check
        %p176 = pneg %p70
      $region14: #{depthwise_separable_conv2d.1} parent=11 // pred_check_branch
        %178 = sbr.rel (%p176) target = $region16
      $region15: #{depthwise_separable_conv2d.1} parent=11 // pred_region
        _
      $region16: #{depthwise_separable_conv2d.1} parent=11 // pred_fallthru
        _
      // Predicated region
      $region17: #{depthwise_separable_conv2d.1} parent=11 // pred_check
        %p179 = pneg %p91
      $region18: #{depthwise_separable_conv2d.1} parent=11 // pred_check_branch
        %181 = sbr.rel (%p179) target = $region20
      $region19: #{depthwise_separable_conv2d.1} parent=11 // pred_region
        _
      $region20: #{depthwise_separable_conv2d.1} parent=11 // pred_fallthru
        _
      // Predicated region
      $region21: #{depthwise_separable_conv2d.1} parent=11 // pred_check
        %p182 = pneg %p112
      $region22: #{depthwise_separable_conv2d.1} parent=11 // pred_check_branch
        %184 = sbr.rel (%p182) target = $region24
      $region23: #{depthwise_separable_conv2d.1} parent=11 // pred_region
        _
      $region24: #{depthwise_separable_conv2d.1} parent=11 // pred_fallthru
        _
      // Predicated region
      $region25: #{depthwise_separable_conv2d.1} parent=11 // pred_check
        %p185 = pneg %p133
      $region26: #{depthwise_separable_conv2d.1} parent=11 // pred_check_branch
        %187 = sbr.rel (%p185) target = $region28
      $region27: #{depthwise_separable_conv2d.1} parent=11 // pred_region
        _
      $region28: #{depthwise_separable_conv2d.1} parent=11 // pred_fallthru
        _
    $region12: #{depthwise_separable_conv2d.1} parent=5 // pred_fallthru
      _
    %p188 = scmp.lt.s32.totalorder %s11, 4
    // Predicated region
    $region29: #{depthwise_separable_conv2d.1} parent=5 // pred_check
      %p189 = pneg %p188
    $region30: #{depthwise_separable_conv2d.1} parent=5 // pred_check_branch
      %191 = sbr.rel (%p189) target = $region32
    $region31: #{depthwise_separable_conv2d.1} parent=5 // pred_region
      // Predicated region
      $region33: #{depthwise_separable_conv2d.1} parent=31 // pred_check
        %p192 = pneg %p43
      $region34: #{depthwise_separable_conv2d.1} parent=31 // pred_check_branch
        %194 = sbr.rel (%p192) target = $region36
      $region35: #{depthwise_separable_conv2d.1} parent=31 // pred_region
        %p195 = scmp.lt.s32.totalorder %s18, 1
        %s196 = scalar_select %p195, %s18, 1
        %s197 = smul.addr %s196, 54
        %s198 = smul.addr %s197, 8
        %s199 = scalar_lea.vmem %s0, %s198
      $region36: #{depthwise_separable_conv2d.1} parent=31 // pred_fallthru
        _
    $region32: #{depthwise_separable_conv2d.1} parent=5 // pred_fallthru
      _
    %p200 = scmp.le.s32.totalorder 1, %s11
    %p201 = scmp.lt.s32.totalorder %s11, 5
    %p202 = pnand %p200, %p201
    %p203 = pneg %p202
    // Predicated region
    $region37: #{depthwise_separable_conv2d.1} parent=5 // pred_check
      _
    $region38: #{depthwise_separable_conv2d.1} parent=5 // pred_check_branch
      %205 = sbr.rel (%p202) target = $region40
    $region39: #{depthwise_separable_conv2d.1} parent=5 // pred_region
      %s206 = ssub.s32 %s11, 1
      %p207 = scmp.lt.s32.totalorder %s20, 1
      %s208 = scalar_select %p207, %s20, 1
      %s209 = smul.addr %s208, 54
      %s210 = smul.addr %s209, 8
      %s211 = scalar_lea.vmem %s0, %s210
      %p212 = pneg %p49
      %p213 = pneg %p46
      %p214 = pneg %p70
      %p215 = pneg %p67
      %p216 = pneg %p91
      %p217 = pneg %p88
      %p218 = pneg %p112
      %p219 = pneg %p109
      %p220 = pneg %p133
      %p221 = pneg %p130
      %p222 = pneg %p161
      %p223 = pneg %p158
      %s224 = smul.u32 8, %s21
      %p225 = scmp.lt.s32.totalorder %s20, 1
      %s226 = scalar_select %p225, %s20, 1
      %p227 = scmp.lt.s32.totalorder %s224, 15
      %s228 = scalar_select %p227, %s224, 15
      %s229 = smul.addr %s228, 2
      %s230 = smul.addr %s226, 32
      %s231 = sadd.s32 %s229, %s230
      %s232 = smul.addr %s231, 8
      %s233 = scalar_lea.vmem %s5, %s232
      %p234 = scmp.lt.s32.totalorder %s20, 1
      %s235 = scalar_select %p234, %s20, 1
      %s236 = smul.addr %s235, 54
      %s237 = smul.addr %s236, 8
      %s238 = scalar_lea.vmem %s0, %s237
      %s239 = smul.u32 8, %s21
      %p240 = scmp.lt.s32.totalorder %s20, 1
      %s241 = scalar_select %p240, %s20, 1
      %p242 = scmp.lt.s32.totalorder %s239, 15
      %s243 = scalar_select %p242, %s239, 15
      %s244 = smul.addr %s243, 2
      %s245 = smul.addr %s241, 32
      %s246 = sadd.s32 %s244, %s245
      %s247 = smul.addr %s246, 8
      %s248 = scalar_lea.vmem %s5, %s247
      %s249 = smul.u32 8, %s21
      %s250 = smul.u32 %s21, 8
      %s251 = smul.u32 %s250, 24
      %s252 = scalar_lea.vmem %s238, %s251
      %v253 = vld [vmem:[%s252] sm:$0xff]
      %v254 = vld [vmem:[%s252 + $0x8] sm:$0xff]
      %v255 = vld [vmem:[%s252 + $0x18] sm:$0xff]
      %v256 = vld [vmem:[%s252 + $0x20] sm:$0xff]
      %v257 = vld [vmem:[%s252 + $0x30] sm:$0xff]
      %v258 = vld [vmem:[%s252 + $0x38] sm:$0xff]
      %v259 = vld [vmem:[%s252 + $0x48] sm:$0xff]
      %v260 = vld [vmem:[%s252 + $0x50] sm:$0xff]
      %v261 = vld [vmem:[%s252 + $0x60] sm:$0xff]
      %v262 = vld [vmem:[%s252 + $0x68] sm:$0xff]
      %v263 = vld [vmem:[%s252 + $0x78] sm:$0xff]
      %v264 = vld [vmem:[%s252 + $0x80] sm:$0xff]
      %v265 = vld [vmem:[%s252 + $0x90] sm:$0xff]
      %v266 = vld [vmem:[%s252 + $0x98] sm:$0xff]
      %v267 = vld [vmem:[%s252 + $0xa8] sm:$0xff]
      %v268 = vld [vmem:[%s252 + $0xb0] sm:$0xff]
      %v269 = vld [vmem:[%s1] sm:$0x1]
      %v271 = vlaneseq
      %v272 = vshrl.u32 %v271, 7
      %v273 = vsub.s32 0, %v272
      %v274 = vrot.slane %v269, %v273
      %v276 = vmul.f32 %v253, %v274
      %v277 = vmul.f32 %v254, %v274
      %v278 = vmul.f32 %v255, %v274
      %v279 = vmul.f32 %v256, %v274
      %v280 = vmul.f32 %v257, %v274
      %v281 = vmul.f32 %v258, %v274
      %v282 = vmul.f32 %v259, %v274
      %v283 = vmul.f32 %v260, %v274
      %v284 = vmul.f32 %v261, %v274
      %v285 = vmul.f32 %v262, %v274
      %v286 = vmul.f32 %v263, %v274
      %v287 = vmul.f32 %v264, %v274
      %v288 = vmul.f32 %v265, %v274
      %v289 = vmul.f32 %v266, %v274
      %v290 = vmul.f32 %v267, %v274
      %v291 = vmul.f32 %v268, %v274
      %v292 = vadd.f32 %v276, 0.0
      %v293 = vadd.f32 %v277, 0.0
      %v294 = vadd.f32 %v278, 0.0
      %v295 = vadd.f32 %v279, 0.0
      %v296 = vadd.f32 %v280, 0.0
      %v297 = vadd.f32 %v281, 0.0
      %v298 = vadd.f32 %v282, 0.0
      %v299 = vadd.f32 %v283, 0.0
      %v300 = vadd.f32 %v284, 0.0
      %v301 = vadd.f32 %v285, 0.0
      %v302 = vadd.f32 %v286, 0.0
      %v303 = vadd.f32 %v287, 0.0
      %v304 = vadd.f32 %v288, 0.0
      %v305 = vadd.f32 %v289, 0.0
      %v306 = vadd.f32 %v290, 0.0
      %v307 = vadd.f32 %v291, 0.0
      %v308 = vld [vmem:[%s252 + $0x1] sm:$0xff]
      %v309 = vld [vmem:[%s252 + $0x9] sm:$0xff]
      %v310 = vld [vmem:[%s252 + $0x19] sm:$0xff]
      %v311 = vld [vmem:[%s252 + $0x21] sm:$0xff]
      %v312 = vld [vmem:[%s252 + $0x31] sm:$0xff]
      %v313 = vld [vmem:[%s252 + $0x39] sm:$0xff]
      %v314 = vld [vmem:[%s252 + $0x49] sm:$0xff]
      %v315 = vld [vmem:[%s252 + $0x51] sm:$0xff]
      %v316 = vld [vmem:[%s252 + $0x61] sm:$0xff]
      %v317 = vld [vmem:[%s252 + $0x69] sm:$0xff]
      %v318 = vld [vmem:[%s252 + $0x79] sm:$0xff]
      %v319 = vld [vmem:[%s252 + $0x81] sm:$0xff]
      %v320 = vld [vmem:[%s252 + $0x91] sm:$0xff]
      %v321 = vld [vmem:[%s252 + $0x99] sm:$0xff]
      %v322 = vld [vmem:[%s252 + $0xa9] sm:$0xff]
      %v323 = vld [vmem:[%s252 + $0xb1] sm:$0xff]
      %s324 = scalar_lea.vmem %s1, 1
      %v325 = vld [vmem:[%s324] sm:$0x1]
      %v327 = vlaneseq
      %v328 = vshrl.u32 %v327, 7
      %v329 = vsub.s32 0, %v328
      %v330 = vrot.slane %v325, %v329
      %v332 = vmul.f32 %v308, %v330
      %v333 = vmul.f32 %v309, %v330
      %v334 = vmul.f32 %v310, %v330
      %v335 = vmul.f32 %v311, %v330
      %v336 = vmul.f32 %v312, %v330
      %v337 = vmul.f32 %v313, %v330
      %v338 = vmul.f32 %v314, %v330
      %v339 = vmul.f32 %v315, %v330
      %v340 = vmul.f32 %v316, %v330
      %v341 = vmul.f32 %v317, %v330
      %v342 = vmul.f32 %v318, %v330
      %v343 = vmul.f32 %v319, %v330
      %v344 = vmul.f32 %v320, %v330
      %v345 = vmul.f32 %v321, %v330
      %v346 = vmul.f32 %v322, %v330
      %v347 = vmul.f32 %v323, %v330
      %v348 = vadd.f32 %v292, %v332
      %v349 = vadd.f32 %v293, %v333
      %v350 = vadd.f32 %v294, %v334
      %v351 = vadd.f32 %v295, %v335
      %v352 = vadd.f32 %v296, %v336
      %v353 = vadd.f32 %v297, %v337
      %v354 = vadd.f32 %v298, %v338
      %v355 = vadd.f32 %v299, %v339
      %v356 = vadd.f32 %v300, %v340
      %v357 = vadd.f32 %v301, %v341
      %v358 = vadd.f32 %v302, %v342
      %v359 = vadd.f32 %v303, %v343
      %v360 = vadd.f32 %v304, %v344
      %v361 = vadd.f32 %v305, %v345
      %v362 = vadd.f32 %v306, %v346
      %v363 = vadd.f32 %v307, %v347
      %v364 = vld [vmem:[%s252 + $0x2] sm:$0xff]
      %v365 = vld [vmem:[%s252 + $0xa] sm:$0xff]
      %v366 = vld [vmem:[%s252 + $0x1a] sm:$0xff]
      %v367 = vld [vmem:[%s252 + $0x22] sm:$0xff]
      %v368 = vld [vmem:[%s252 + $0x32] sm:$0xff]
      %v369 = vld [vmem:[%s252 + $0x3a] sm:$0xff]
      %v370 = vld [vmem:[%s252 + $0x4a] sm:$0xff]
      %v371 = vld [vmem:[%s252 + $0x52] sm:$0xff]
      %v372 = vld [vmem:[%s252 + $0x62] sm:$0xff]
      %v373 = vld [vmem:[%s252 + $0x6a] sm:$0xff]
      %v374 = vld [vmem:[%s252 + $0x7a] sm:$0xff]
      %v375 = vld [vmem:[%s252 + $0x82] sm:$0xff]
      %v376 = vld [vmem:[%s252 + $0x92] sm:$0xff]
      %v377 = vld [vmem:[%s252 + $0x9a] sm:$0xff]
      %v378 = vld [vmem:[%s252 + $0xaa] sm:$0xff]
      %v379 = vld [vmem:[%s252 + $0xb2] sm:$0xff]
      %s380 = scalar_lea.vmem %s1, 2
      %v381 = vld [vmem:[%s380] sm:$0x1]
      %v383 = vlaneseq
      %v384 = vshrl.u32 %v383, 7
      %v385 = vsub.s32 0, %v384
      %v386 = vrot.slane %v381, %v385
      %v388 = vmul.f32 %v364, %v386
      %v389 = vmul.f32 %v365, %v386
      %v390 = vmul.f32 %v366, %v386
      %v391 = vmul.f32 %v367, %v386
      %v392 = vmul.f32 %v368, %v386
      %v393 = vmul.f32 %v369, %v386
      %v394 = vmul.f32 %v370, %v386
      %v395 = vmul.f32 %v371, %v386
      %v396 = vmul.f32 %v372, %v386
      %v397 = vmul.f32 %v373, %v386
      %v398 = vmul.f32 %v374, %v386
      %v399 = vmul.f32 %v375, %v386
      %v400 = vmul.f32 %v376, %v386
      %v401 = vmul.f32 %v377, %v386
      %v402 = vmul.f32 %v378, %v386
      %v403 = vmul.f32 %v379, %v386
      %v404 = vadd.f32 %v348, %v388
      %v405 = vadd.f32 %v349, %v389
      %v406 = vadd.f32 %v350, %v390
      %v407 = vadd.f32 %v351, %v391
      %v408 = vadd.f32 %v352, %v392
      %v409 = vadd.f32 %v353, %v393
      %v410 = vadd.f32 %v354, %v394
      %v411 = vadd.f32 %v355, %v395
      %v412 = vadd.f32 %v356, %v396
      %v413 = vadd.f32 %v357, %v397
      %v414 = vadd.f32 %v358, %v398
      %v415 = vadd.f32 %v359, %v399
      %v416 = vadd.f32 %v360, %v400
      %v417 = vadd.f32 %v361, %v401
      %v418 = vadd.f32 %v362, %v402
      %v419 = vadd.f32 %v363, %v403
      %s420 = sadd.s32 %s250, 1
      %s421 = smul.u32 %s420, 24
      %s422 = scalar_lea.vmem %s238, %s421
      %v423 = vld [vmem:[%s422] sm:$0xff]
      %v424 = vld [vmem:[%s422 + $0x8] sm:$0xff]
      %v425 = vld [vmem:[%s422 + $0x18] sm:$0xff]
      %v426 = vld [vmem:[%s422 + $0x20] sm:$0xff]
      %v427 = vld [vmem:[%s422 + $0x30] sm:$0xff]
      %v428 = vld [vmem:[%s422 + $0x38] sm:$0xff]
      %v429 = vld [vmem:[%s422 + $0x48] sm:$0xff]
      %v430 = vld [vmem:[%s422 + $0x50] sm:$0xff]
      %v431 = vld [vmem:[%s422 + $0x60] sm:$0xff]
      %v432 = vld [vmem:[%s422 + $0x68] sm:$0xff]
      %v433 = vld [vmem:[%s422 + $0x78] sm:$0xff]
      %v434 = vld [vmem:[%s422 + $0x80] sm:$0xff]
      %v435 = vld [vmem:[%s422 + $0x90] sm:$0xff]
      %v436 = vld [vmem:[%s422 + $0x98] sm:$0xff]
      %v437 = vld [vmem:[%s422 + $0xa8] sm:$0xff]
      %v438 = vld [vmem:[%s422 + $0xb0] sm:$0xff]
      %s439 = scalar_lea.vmem %s1, 3
      %v440 = vld [vmem:[%s439] sm:$0x1]
      %v442 = vlaneseq
      %v443 = vshrl.u32 %v442, 7
      %v444 = vsub.s32 0, %v443
      %v445 = vrot.slane %v440, %v444
      %v447 = vmul.f32 %v423, %v445
      %v448 = vmul.f32 %v424, %v445
      %v449 = vmul.f32 %v425, %v445
      %v450 = vmul.f32 %v426, %v445
      %v451 = vmul.f32 %v427, %v445
      %v452 = vmul.f32 %v428, %v445
      %v453 = vmul.f32 %v429, %v445
      %v454 = vmul.f32 %v430, %v445
      %v455 = vmul.f32 %v431, %v445
      %v456 = vmul.f32 %v432, %v445
      %v457 = vmul.f32 %v433, %v445
      %v458 = vmul.f32 %v434, %v445
      %v459 = vmul.f32 %v435, %v445
      %v460 = vmul.f32 %v436, %v445
      %v461 = vmul.f32 %v437, %v445
      %v462 = vmul.f32 %v438, %v445
      %v463 = vadd.f32 %v404, %v447
      %v464 = vadd.f32 %v405, %v448
      %v465 = vadd.f32 %v406, %v449
      %v466 = vadd.f32 %v407, %v450
      %v467 = vadd.f32 %v408, %v451
      %v468 = vadd.f32 %v409, %v452
      %v469 = vadd.f32 %v410, %v453
      %v470 = vadd.f32 %v411, %v454
      %v471 = vadd.f32 %v412, %v455
      %v472 = vadd.f32 %v413, %v456
      %v473 = vadd.f32 %v414, %v457
      %v474 = vadd.f32 %v415, %v458
      %v475 = vadd.f32 %v416, %v459
      %v476 = vadd.f32 %v417, %v460
      %v477 = vadd.f32 %v418, %v461
      %v478 = vadd.f32 %v419, %v462
      %v479 = vld [vmem:[%s422 + $0x1] sm:$0xff]
      %v480 = vld [vmem:[%s422 + $0x9] sm:$0xff]
      %v481 = vld [vmem:[%s422 + $0x19] sm:$0xff]
      %v482 = vld [vmem:[%s422 + $0x21] sm:$0xff]
      %v483 = vld [vmem:[%s422 + $0x31] sm:$0xff]
      %v484 = vld [vmem:[%s422 + $0x39] sm:$0xff]
      %v485 = vld [vmem:[%s422 + $0x49] sm:$0xff]
      %v486 = vld [vmem:[%s422 + $0x51] sm:$0xff]
      %v487 = vld [vmem:[%s422 + $0x61] sm:$0xff]
      %v488 = vld [vmem:[%s422 + $0x69] sm:$0xff]
      %v489 = vld [vmem:[%s422 + $0x79] sm:$0xff]
      %v490 = vld [vmem:[%s422 + $0x81] sm:$0xff]
      %v491 = vld [vmem:[%s422 + $0x91] sm:$0xff]
      %v492 = vld [vmem:[%s422 + $0x99] sm:$0xff]
      %v493 = vld [vmem:[%s422 + $0xa9] sm:$0xff]
      %v494 = vld [vmem:[%s422 + $0xb1] sm:$0xff]
      %s495 = scalar_lea.vmem %s1, 4
      %v496 = vld [vmem:[%s495] sm:$0x1]
      %v498 = vlaneseq
      %v499 = vshrl.u32 %v498, 7
      %v500 = vsub.s32 0, %v499
      %v501 = vrot.slane %v496, %v500
      %v503 = vmul.f32 %v479, %v501
      %v504 = vmul.f32 %v480, %v501
      %v505 = vmul.f32 %v481, %v501
      %v506 = vmul.f32 %v482, %v501
      %v507 = vmul.f32 %v483, %v501
      %v508 = vmul.f32 %v484, %v501
      %v509 = vmul.f32 %v485, %v501
      %v510 = vmul.f32 %v486, %v501
      %v511 = vmul.f32 %v487, %v501
      %v512 = vmul.f32 %v488, %v501
      %v513 = vmul.f32 %v489, %v501
      %v514 = vmul.f32 %v490, %v501
      %v515 = vmul.f32 %v491, %v501
      %v516 = vmul.f32 %v492, %v501
      %v517 = vmul.f32 %v493, %v501
      %v518 = vmul.f32 %v494, %v501
      %v519 = vadd.f32 %v463, %v503
      %v520 = vadd.f32 %v464, %v504
      %v521 = vadd.f32 %v465, %v505
      %v522 = vadd.f32 %v466, %v506
      %v523 = vadd.f32 %v467, %v507
      %v524 = vadd.f32 %v468, %v508
      %v525 = vadd.f32 %v469, %v509
      %v526 = vadd.f32 %v470, %v510
      %v527 = vadd.f32 %v471, %v511
      %v528 = vadd.f32 %v472, %v512
      %v529 = vadd.f32 %v473, %v513
      %v530 = vadd.f32 %v474, %v514
      %v531 = vadd.f32 %v475, %v515
      %v532 = vadd.f32 %v476, %v516
      %v533 = vadd.f32 %v477, %v517
      %v534 = vadd.f32 %v478, %v518
      %v535 = vld [vmem:[%s422 + $0x2] sm:$0xff]
      %v536 = vld [vmem:[%s422 + $0xa] sm:$0xff]
      %v537 = vld [vmem:[%s422 + $0x1a] sm:$0xff]
      %v538 = vld [vmem:[%s422 + $0x22] sm:$0xff]
      %v539 = vld [vmem:[%s422 + $0x32] sm:$0xff]
      %v540 = vld [vmem:[%s422 + $0x3a] sm:$0xff]
      %v541 = vld [vmem:[%s422 + $0x4a] sm:$0xff]
      %v542 = vld [vmem:[%s422 + $0x52] sm:$0xff]
      %v543 = vld [vmem:[%s422 + $0x62] sm:$0xff]
      %v544 = vld [vmem:[%s422 + $0x6a] sm:$0xff]
      %v545 = vld [vmem:[%s422 + $0x7a] sm:$0xff]
      %v546 = vld [vmem:[%s422 + $0x82] sm:$0xff]
      %v547 = vld [vmem:[%s422 + $0x92] sm:$0xff]
      %v548 = vld [vmem:[%s422 + $0x9a] sm:$0xff]
      %v549 = vld [vmem:[%s422 + $0xaa] sm:$0xff]
      %v550 = vld [vmem:[%s422 + $0xb2] sm:$0xff]
      %s551 = scalar_lea.vmem %s1, 5
      %v552 = vld [vmem:[%s551] sm:$0x1]
      %v554 = vlaneseq
      %v555 = vshrl.u32 %v554, 7
      %v556 = vsub.s32 0, %v555
      %v557 = vrot.slane %v552, %v556
      %v559 = vmul.f32 %v535, %v557
      %v560 = vmul.f32 %v536, %v557
      %v561 = vmul.f32 %v537, %v557
      %v562 = vmul.f32 %v538, %v557
      %v563 = vmul.f32 %v539, %v557
      %v564 = vmul.f32 %v540, %v557
      %v565 = vmul.f32 %v541, %v557
      %v566 = vmul.f32 %v542, %v557
      %v567 = vmul.f32 %v543, %v557
      %v568 = vmul.f32 %v544, %v557
      %v569 = vmul.f32 %v545, %v557
      %v570 = vmul.f32 %v546, %v557
      %v571 = vmul.f32 %v547, %v557
      %v572 = vmul.f32 %v548, %v557
      %v573 = vmul.f32 %v549, %v557
      %v574 = vmul.f32 %v550, %v557
      %v575 = vadd.f32 %v519, %v559
      %v576 = vadd.f32 %v520, %v560
      %v577 = vadd.f32 %v521, %v561
      %v578 = vadd.f32 %v522, %v562
      %v579 = vadd.f32 %v523, %v563
      %v580 = vadd.f32 %v524, %v564
      %v581 = vadd.f32 %v525, %v565
      %v582 = vadd.f32 %v526, %v566
      %v583 = vadd.f32 %v527, %v567
      %v584 = vadd.f32 %v528, %v568
      %v585 = vadd.f32 %v529, %v569
      %v586 = vadd.f32 %v530, %v570
      %v587 = vadd.f32 %v531, %v571
      %v588 = vadd.f32 %v532, %v572
      %v589 = vadd.f32 %v533, %v573
      %v590 = vadd.f32 %v534, %v574
      %s591 = sadd.s32 %s250, 2
      %s592 = smul.u32 %s591, 24
      %s593 = scalar_lea.vmem %s238, %s592
      %v594 = vld [vmem:[%s593] sm:$0xff]
      %v595 = vld [vmem:[%s593 + $0x8] sm:$0xff]
      %v596 = vld [vmem:[%s593 + $0x18] sm:$0xff]
      %v597 = vld [vmem:[%s593 + $0x20] sm:$0xff]
      %v598 = vld [vmem:[%s593 + $0x30] sm:$0xff]
      %v599 = vld [vmem:[%s593 + $0x38] sm:$0xff]
      %v600 = vld [vmem:[%s593 + $0x48] sm:$0xff]
      %v601 = vld [vmem:[%s593 + $0x50] sm:$0xff]
      %v602 = vld [vmem:[%s593 + $0x60] sm:$0xff]
      %v603 = vld [vmem:[%s593 + $0x68] sm:$0xff]
      %v604 = vld [vmem:[%s593 + $0x78] sm:$0xff]
      %v605 = vld [vmem:[%s593 + $0x80] sm:$0xff]
      %v606 = vld [vmem:[%s593 + $0x90] sm:$0xff]
      %v607 = vld [vmem:[%s593 + $0x98] sm:$0xff]
      %v608 = vld [vmem:[%s593 + $0xa8] sm:$0xff]
      %v609 = vld [vmem:[%s593 + $0xb0] sm:$0xff]
      %s610 = scalar_lea.vmem %s1, 6
      %v611 = vld [vmem:[%s610] sm:$0x1]
      %v613 = vlaneseq
      %v614 = vshrl.u32 %v613, 7
      %v615 = vsub.s32 0, %v614
      %v616 = vrot.slane %v611, %v615
      %v618 = vmul.f32 %v594, %v616
      %v619 = vmul.f32 %v595, %v616
      %v620 = vmul.f32 %v596, %v616
      %v621 = vmul.f32 %v597, %v616
      %v622 = vmul.f32 %v598, %v616
      %v623 = vmul.f32 %v599, %v616
      %v624 = vmul.f32 %v600, %v616
      %v625 = vmul.f32 %v601, %v616
      %v626 = vmul.f32 %v602, %v616
      %v627 = vmul.f32 %v603, %v616
      %v628 = vmul.f32 %v604, %v616
      %v629 = vmul.f32 %v605, %v616
      %v630 = vmul.f32 %v606, %v616
      %v631 = vmul.f32 %v607, %v616
      %v632 = vmul.f32 %v608, %v616
      %v633 = vmul.f32 %v609, %v616
      %v634 = vadd.f32 %v575, %v618
      %v635 = vadd.f32 %v576, %v619
      %v636 = vadd.f32 %v577, %v620
      %v637 = vadd.f32 %v578, %v621
      %v638 = vadd.f32 %v579, %v622
      %v639 = vadd.f32 %v580, %v623
      %v640 = vadd.f32 %v581, %v624
      %v641 = vadd.f32 %v582, %v625
      %v642 = vadd.f32 %v583, %v626
      %v643 = vadd.f32 %v584, %v627
      %v644 = vadd.f32 %v585, %v628
      %v645 = vadd.f32 %v586, %v629
      %v646 = vadd.f32 %v587, %v630
      %v647 = vadd.f32 %v588, %v631
      %v648 = vadd.f32 %v589, %v632
      %v649 = vadd.f32 %v590, %v633
      %v650 = vld [vmem:[%s593 + $0x1] sm:$0xff]
      %v651 = vld [vmem:[%s593 + $0x9] sm:$0xff]
      %v652 = vld [vmem:[%s593 + $0x19] sm:$0xff]
      %v653 = vld [vmem:[%s593 + $0x21] sm:$0xff]
      %v654 = vld [vmem:[%s593 + $0x31] sm:$0xff]
      %v655 = vld [vmem:[%s593 + $0x39] sm:$0xff]
      %v656 = vld [vmem:[%s593 + $0x49] sm:$0xff]
      %v657 = vld [vmem:[%s593 + $0x51] sm:$0xff]
      %v658 = vld [vmem:[%s593 + $0x61] sm:$0xff]
      %v659 = vld [vmem:[%s593 + $0x69] sm:$0xff]
      %v660 = vld [vmem:[%s593 + $0x79] sm:$0xff]
      %v661 = vld [vmem:[%s593 + $0x81] sm:$0xff]
      %v662 = vld [vmem:[%s593 + $0x91] sm:$0xff]
      %v663 = vld [vmem:[%s593 + $0x99] sm:$0xff]
      %v664 = vld [vmem:[%s593 + $0xa9] sm:$0xff]
      %v665 = vld [vmem:[%s593 + $0xb1] sm:$0xff]
      %s666 = scalar_lea.vmem %s1, 7
      %v667 = vld [vmem:[%s666] sm:$0x1]
      %v669 = vlaneseq
      %v670 = vshrl.u32 %v669, 7
      %v671 = vsub.s32 0, %v670
      %v672 = vrot.slane %v667, %v671
      %v674 = vmul.f32 %v650, %v672
      %v675 = vmul.f32 %v651, %v672
      %v676 = vmul.f32 %v652, %v672
      %v677 = vmul.f32 %v653, %v672
      %v678 = vmul.f32 %v654, %v672
      %v679 = vmul.f32 %v655, %v672
      %v680 = vmul.f32 %v656, %v672
      %v681 = vmul.f32 %v657, %v672
      %v682 = vmul.f32 %v658, %v672
      %v683 = vmul.f32 %v659, %v672
      %v684 = vmul.f32 %v660, %v672
      %v685 = vmul.f32 %v661, %v672
      %v686 = vmul.f32 %v662, %v672
      %v687 = vmul.f32 %v663, %v672
      %v688 = vmul.f32 %v664, %v672
      %v689 = vmul.f32 %v665, %v672
      %v690 = vadd.f32 %v634, %v674
      %v691 = vadd.f32 %v635, %v675
      %v692 = vadd.f32 %v636, %v676
      %v693 = vadd.f32 %v637, %v677
      %v694 = vadd.f32 %v638, %v678
      %v695 = vadd.f32 %v639, %v679
      %v696 = vadd.f32 %v640, %v680
      %v697 = vadd.f32 %v641, %v681
      %v698 = vadd.f32 %v642, %v682
      %v699 = vadd.f32 %v643, %v683
      %v700 = vadd.f32 %v644, %v684
      %v701 = vadd.f32 %v645, %v685
      %v702 = vadd.f32 %v646, %v686
      %v703 = vadd.f32 %v647, %v687
      %v704 = vadd.f32 %v648, %v688
      %v705 = vadd.f32 %v649, %v689
      %v706 = vld [vmem:[%s593 + $0x2] sm:$0xff]
      %v707 = vld [vmem:[%s593 + $0xa] sm:$0xff]
      %v708 = vld [vmem:[%s593 + $0x1a] sm:$0xff]
      %v709 = vld [vmem:[%s593 + $0x22] sm:$0xff]
      %v710 = vld [vmem:[%s593 + $0x32] sm:$0xff]
      %v711 = vld [vmem:[%s593 + $0x3a] sm:$0xff]
      %v712 = vld [vmem:[%s593 + $0x4a] sm:$0xff]
      %v713 = vld [vmem:[%s593 + $0x52] sm:$0xff]
      %v714 = vld [vmem:[%s593 + $0x62] sm:$0xff]
      %v715 = vld [vmem:[%s593 + $0x6a] sm:$0xff]
      %v716 = vld [vmem:[%s593 + $0x7a] sm:$0xff]
      %v717 = vld [vmem:[%s593 + $0x82] sm:$0xff]
      %v718 = vld [vmem:[%s593 + $0x92] sm:$0xff]
      %v719 = vld [vmem:[%s593 + $0x9a] sm:$0xff]
      %v720 = vld [vmem:[%s593 + $0xaa] sm:$0xff]
      %v721 = vld [vmem:[%s593 + $0xb2] sm:$0xff]
      %s722 = scalar_lea.vmem %s1, 8
      %v723 = vld [vmem:[%s722] sm:$0x1]
      %v725 = vlaneseq
      %v726 = vshrl.u32 %v725, 7
      %v727 = vsub.s32 0, %v726
      %v728 = vrot.slane %v723, %v727
      %v730 = vmul.f32 %v706, %v728
      %v731 = vmul.f32 %v707, %v728
      %v732 = vmul.f32 %v708, %v728
      %v733 = vmul.f32 %v709, %v728
      %v734 = vmul.f32 %v710, %v728
      %v735 = vmul.f32 %v711, %v728
      %v736 = vmul.f32 %v712, %v728
      %v737 = vmul.f32 %v713, %v728
      %v738 = vmul.f32 %v714, %v728
      %v739 = vmul.f32 %v715, %v728
      %v740 = vmul.f32 %v716, %v728
      %v741 = vmul.f32 %v717, %v728
      %v742 = vmul.f32 %v718, %v728
      %v743 = vmul.f32 %v719, %v728
      %v744 = vmul.f32 %v720, %v728
      %v745 = vmul.f32 %v721, %v728
      %v746 = vadd.f32 %v690, %v730
      %v747 = vadd.f32 %v691, %v731
      %v748 = vadd.f32 %v692, %v732
      %v749 = vadd.f32 %v693, %v733
      %v750 = vadd.f32 %v694, %v734
      %v751 = vadd.f32 %v695, %v735
      %v752 = vadd.f32 %v696, %v736
      %v753 = vadd.f32 %v697, %v737
      %v754 = vadd.f32 %v698, %v738
      %v755 = vadd.f32 %v699, %v739
      %v756 = vadd.f32 %v700, %v740
      %v757 = vadd.f32 %v701, %v741
      %v758 = vadd.f32 %v702, %v742
      %v759 = vadd.f32 %v703, %v743
      %v760 = vadd.f32 %v704, %v744
      %v761 = vadd.f32 %v705, %v745
      %v762 = vld [vmem:[%s2] sm:$0x1]
      %v764 = vlaneseq
      %v765 = vshrl.u32 %v764, 7
      %v766 = vsub.s32 0, %v765
      %v767 = vrot.slane %v762, %v766
      %v769 = vadd.f32 %v746, %v767
      %v770 = vadd.f32 %v747, %v767
      %v771 = vadd.f32 %v748, %v767
      %v772 = vadd.f32 %v749, %v767
      %v773 = vadd.f32 %v750, %v767
      %v774 = vadd.f32 %v751, %v767
      %v775 = vadd.f32 %v752, %v767
      %v776 = vadd.f32 %v753, %v767
      %v777 = vadd.f32 %v754, %v767
      %v778 = vadd.f32 %v755, %v767
      %v779 = vadd.f32 %v756, %v767
      %v780 = vadd.f32 %v757, %v767
      %v781 = vadd.f32 %v758, %v767
      %v782 = vadd.f32 %v759, %v767
      %v783 = vadd.f32 %v760, %v767
      %v784 = vadd.f32 %v761, %v767
      %v785 = vld [vmem:[%s3] sm:$0xf]
      %v786 = vld [vmem:[%s4] sm:$0x1]
      %v788 = vlaneseq
      %v789 = vshrl.u32 %v788, 7
      %v790 = vsub.s32 0, %v789
      %v791 = vrot.slane %v786, %v790
      %vm793 = vcmask 31744
      %v795 = vsel %vm793, %v769, 0
      %v798 = vsel %vm793, %v770, 0
      %v801 = vsel %vm793, %v771, 0
      %v804 = vsel %vm793, %v772, 0
      %v807 = vsel %vm793, %v773, 0
      %v810 = vsel %vm793, %v774, 0
      %v813 = vsel %vm793, %v775, 0
      %v816 = vsel %vm793, %v776, 0
      %v819 = vsel %vm793, %v777, 0
      %v822 = vsel %vm793, %v778, 0
      %v825 = vsel %vm793, %v779, 0
      %v828 = vsel %vm793, %v780, 0
      %v831 = vsel %vm793, %v781, 0
      %v834 = vsel %vm793, %v782, 0
      %v837 = vsel %vm793, %v783, 0
      %v840 = vsel %vm793, %v784, 0
      %vm842 = vcmask 1043456
      %v844 = vsel %vm842, %v785, 0
      %846 = vmatprep.subr.mxu0 0.0
      %847 = vmatpush1.msra.mxu0 %v844
      %848 = vmatprep.subr.mxu0 0.0
      %849 = vmatpush1.msra.mxu0 0.0
      %850 = vmatprep.subr.mxu0 0.0
      %851 = vmatpush1.msra.mxu0 0.0
      %852 = vmatprep.subr.mxu0 0.0
      %853 = vmatpush1.msra.mxu0 0.0
      %854 = vmatprep.subr.mxu0 0.0
      %855 = vmatpush1.msra.mxu0 0.0
      %856 = vmatprep.subr.mxu0 0.0
      %857 = vmatpush1.msra.mxu0 0.0
      %858 = vmatprep.subr.mxu0 0.0
      %859 = vmatpush1.msra.mxu0 0.0
      %860 = vmatprep.subr.mxu0 0.0
      %861 = vmatpush1.msra.mxu0 0.0
      %862 = vmatprep.subr.mxu0 0.0
      %863 = vmatpush1.msra.mxu0 0.0
      %864 = vmatprep.subr.mxu0 0.0
      %865 = vmatpush1.msra.mxu0 0.0
      %866 = vmatprep.subr.mxu0 0.0
      %867 = vmatpush1.msra.mxu0 0.0
      %868 = vmatprep.subr.mxu0 0.0
      %869 = vmatpush1.msra.mxu0 0.0
      %870 = vmatprep.subr.mxu0 0.0
      %871 = vmatpush1.msra.mxu0 0.0
      %872 = vmatprep.subr.mxu0 0.0
      %873 = vmatpush1.msra.mxu0 0.0
      %874 = vmatprep.subr.mxu0 0.0
      %875 = vmatpush1.msra.mxu0 0.0
      %876 = vmatprep.subr.mxu0 0.0
      %877 = vmatpush1.msra.mxu0 0.0
      %878 = vmatprep.subr.mxu0 0.0
      %879 = vmatpush1.msra.mxu0 0.0
      %880 = vmatprep.subr.mxu0 0.0
      %881 = vmatpush1.msra.mxu0 0.0
      %882 = vmatprep.subr.mxu0 0.0
      %883 = vmatpush1.msra.mxu0 0.0
      %884 = vmatprep.subr.mxu0 0.0
      %885 = vmatpush1.msra.mxu0 0.0
      %886 = vmatprep.subr.mxu0 0.0
      %887 = vmatpush1.msra.mxu0 0.0
      %888 = vmatprep.subr.mxu0 0.0
      %889 = vmatpush1.msra.mxu0 0.0
      %890 = vmatprep.subr.mxu0 0.0
      %891 = vmatpush1.msra.mxu0 0.0
      %892 = vmatprep.subr.mxu0 0.0
      %893 = vmatpush1.msra.mxu0 0.0
      %894 = vmatprep.subr.mxu0 0.0
      %895 = vmatpush1.msra.mxu0 0.0
      %896 = vmatprep.subr.mxu0 0.0
      %897 = vmatpush1.msra.mxu0 0.0
      %898 = vmatprep.subr.mxu0 0.0
      %899 = vmatpush1.msra.mxu0 0.0
      %900 = vmatprep.subr.mxu0 0.0
      %901 = vmatpush1.msra.mxu0 0.0
      %902 = vmatprep.subr.mxu0 0.0
      %903 = vmatpush1.msra.mxu0 0.0
      %904 = vmatprep.subr.mxu0 0.0
      %905 = vmatpush1.msra.mxu0 0.0
      %906 = vmatprep.subr.mxu0 0.0
      %907 = vmatpush1.msra.mxu0 0.0
      %908 = vmatprep.subr.mxu0 0.0
      %909 = vmatpush1.msra.mxu0 0.0
      %910 = vmatprep.mubr.f32.mxu0 0.0
      %911 = vmatmul.mubr.f32.gmra.mrb[0].mxu0 %v795
      %v912 = vpop.f32.mrb[0].mxu0
      %v913 = vadd.f32 %v791, %v912
      %v914 = vpop.f32.mrb[0].mxu0
      %915 = vmatprep.mubr.f32.mxu0 0.0
      %916 = vmatmul.mubr.f32.gmra.mrb[0].mxu0 %v798
      %v917 = vpop.f32.mrb[0].mxu0
      %v918 = vadd.f32 %v791, %v917
      %v919 = vpop.f32.mrb[0].mxu0
      %920 = vmatprep.mubr.f32.mxu0 0.0
      %921 = vmatmul.mubr.f32.gmra.mrb[0].mxu0 %v801
      %v922 = vpop.f32.mrb[0].mxu0
      %v923 = vadd.f32 %v791, %v922
      %v924 = vpop.f32.mrb[0].mxu0
      %925 = vmatprep.mubr.f32.mxu0 0.0
      %926 = vmatmul.mubr.f32.gmra.mrb[0].mxu0 %v804
      %v927 = vpop.f32.mrb[0].mxu0
      %v928 = vadd.f32 %v791, %v927
      %v929 = vpop.f32.mrb[0].mxu0
      %930 = vmatprep.mubr.f32.mxu0 0.0
      %931 = vmatmul.mubr.f32.gmra.mrb[0].mxu0 %v807
      %v932 = vpop.f32.mrb[0].mxu0
      %v933 = vadd.f32 %v791, %v932
      %v934 = vpop.f32.mrb[0].mxu0
      %935 = vmatprep.mubr.f32.mxu0 0.0
      %936 = vmatmul.mubr.f32.gmra.mrb[0].mxu0 %v810
      %v937 = vpop.f32.mrb[0].mxu0
      %v938 = vadd.f32 %v791, %v937
      %v939 = vpop.f32.mrb[0].mxu0
      %940 = vmatprep.mubr.f32.mxu0 0.0
      %941 = vmatmul.mubr.f32.gmra.mrb[0].mxu0 %v813
      %v942 = vpop.f32.mrb[0].mxu0
      %v943 = vadd.f32 %v791, %v942
      %v944 = vpop.f32.mrb[0].mxu0
      %945 = vmatprep.mubr.f32.mxu0 0.0
      %946 = vmatmul.mubr.f32.gmra.mrb[0].mxu0 %v816
      %v947 = vpop.f32.mrb[0].mxu0
      %v948 = vadd.f32 %v791, %v947
      %v949 = vpop.f32.mrb[0].mxu0
      %950 = vmatprep.mubr.f32.mxu0 0.0
      %951 = vmatmul.mubr.f32.gmra.mrb[0].mxu0 %v819
      %v952 = vpop.f32.mrb[0].mxu0
      %v953 = vadd.f32 %v791, %v952
      %v954 = vpop.f32.mrb[0].mxu0
      %955 = vmatprep.mubr.f32.mxu0 0.0
      %956 = vmatmul.mubr.f32.gmra.mrb[0].mxu0 %v822
      %v957 = vpop.f32.mrb[0].mxu0
      %v958 = vadd.f32 %v791, %v957
      %v959 = vpop.f32.mrb[0].mxu0
      %960 = vmatprep.mubr.f32.mxu0 0.0
      %961 = vmatmul.mubr.f32.gmra.mrb[0].mxu0 %v825
      %v962 = vpop.f32.mrb[0].mxu0
      %v963 = vadd.f32 %v791, %v962
      %v964 = vpop.f32.mrb[0].mxu0
      %965 = vmatprep.mubr.f32.mxu0 0.0
      %966 = vmatmul.mubr.f32.gmra.mrb[0].mxu0 %v828
      %v967 = vpop.f32.mrb[0].mxu0
      %v968 = vadd.f32 %v791, %v967
      %v969 = vpop.f32.mrb[0].mxu0
      %970 = vmatprep.mubr.f32.mxu0 0.0
      %971 = vmatmul.mubr.f32.gmra.mrb[0].mxu0 %v831
      %v972 = vpop.f32.mrb[0].mxu0
      %v973 = vadd.f32 %v791, %v972
      %v974 = vpop.f32.mrb[0].mxu0
      %975 = vmatprep.mubr.f32.mxu0 0.0
      %976 = vmatmul.mubr.f32.gmra.mrb[0].mxu0 %v834
      %v977 = vpop.f32.mrb[0].mxu0
      %v978 = vadd.f32 %v791, %v977
      %v979 = vpop.f32.mrb[0].mxu0
      %980 = vmatprep.mubr.f32.mxu0 0.0
      %981 = vmatmul.mubr.f32.gmra.mrb[0].mxu0 %v837
      %v982 = vpop.f32.mrb[0].mxu0
      %v983 = vadd.f32 %v791, %v982
      %v984 = vpop.f32.mrb[0].mxu0
      %985 = vmatprep.mubr.f32.mxu0 0.0
      %986 = vmatmul.mubr.f32.gmra.mrb[0].mxu0 %v840
      %v987 = vpop.f32.mrb[0].mxu0
      %v988 = vadd.f32 %v791, %v987
      %v989 = vpop.f32.mrb[0].mxu0
      %990 = vdwg.mxu0
      %vm991 = vcmask 64512
      %992 = vst.msk [vmem:[%s248] sm:$0xff] %vm991, %v913
      %993 = vst.msk [vmem:[%s248 + $0x8] sm:$0xff] %vm991, %v918
      %994 = vst.msk [vmem:[%s248 + $0x10] sm:$0xff] %vm991, %v923
      %995 = vst.msk [vmem:[%s248 + $0x18] sm:$0xff] %vm991, %v928
      %996 = vst.msk [vmem:[%s248 + $0x20] sm:$0xff] %vm991, %v933
      %997 = vst.msk [vmem:[%s248 + $0x28] sm:$0xff] %vm991, %v938
      %998 = vst.msk [vmem:[%s248 + $0x30] sm:$0xff] %vm991, %v943
      %999 = vst.msk [vmem:[%s248 + $0x38] sm:$0xff] %vm991, %v948
      %1000 = vst.msk [vmem:[%s248 + $0x40] sm:$0xff] %vm991, %v953
      %1001 = vst.msk [vmem:[%s248 + $0x48] sm:$0xff] %vm991, %v958
      %1002 = vst.msk [vmem:[%s248 + $0x50] sm:$0xff] %vm991, %v963
      %1003 = vst.msk [vmem:[%s248 + $0x58] sm:$0xff] %vm991, %v968
      %1004 = vst.msk [vmem:[%s248 + $0x60] sm:$0xff] %vm991, %v973
      %1005 = vst.msk [vmem:[%s248 + $0x68] sm:$0xff] %vm991, %v978
      %1006 = vst.msk [vmem:[%s248 + $0x70] sm:$0xff] %vm991, %v983
      %1007 = vst.msk [vmem:[%s248 + $0x78] sm:$0xff] %vm991, %v988
      %s1008 = smul.u32 8, %s21
      %p1009 = scmp.lt.s32.totalorder %s20, 1
      %s1010 = scalar_select %p1009, %s20, 1
      %p1011 = scmp.lt.s32.totalorder %s1008, 15
      %s1012 = scalar_select %p1011, %s1008, 15
      %s1013 = smul.addr %s1012, 2
      %s1014 = smul.addr %s1010, 32
      %s1015 = sadd.s32 %s1013, %s1014
      %s1016 = smul.addr %s1015, 8
      %s1017 = scalar_lea.vmem %s5, %s1016
      // Predicated region
      $region41: #{depthwise_separable_conv2d.1} parent=39 // pred_check
        %p1018 = pneg %p158
      $region42: #{depthwise_separable_conv2d.1} parent=39 // pred_check_branch
        %1020 = sbr.rel (%p1018) target = $region44
      $region43: #{depthwise_separable_conv2d.1} parent=39 // pred_region
        %s1021 = smul.u32 8, %s21
      $region44: #{depthwise_separable_conv2d.1} parent=39 // pred_fallthru
        _
    $region40: #{depthwise_separable_conv2d.1} parent=5 // pred_fallthru
      _
    %p1022 = scmp.le.s32.totalorder 2, %s11
    // Predicated region
    $region45: #{depthwise_separable_conv2d.1} parent=5 // pred_check
      %p1023 = pneg %p1022
    $region46: #{depthwise_separable_conv2d.1} parent=5 // pred_check_branch
      %1025 = sbr.rel (%p1023) target = $region48
    $region47: #{depthwise_separable_conv2d.1} parent=5 // pred_region
      %s1026 = ssub.s32 %s11, 2
      // Predicated region
      $region49: #{depthwise_separable_conv2d.1} parent=47 // pred_check
        %p1027 = pneg %p164
      $region50: #{depthwise_separable_conv2d.1} parent=47 // pred_check_branch
        %1029 = sbr.rel (%p1027) target = $region52
      $region51: #{depthwise_separable_conv2d.1} parent=47 // pred_region
        %s1030 = smul.u32 8, %s23
        %p1031 = scmp.lt.s32.totalorder %s22, 1
        %s1032 = scalar_select %p1031, %s22, 1
        %p1033 = scmp.lt.s32.totalorder %s1030, 15
        %s1034 = scalar_select %p1033, %s1030, 15
        %s1035 = smul.addr %s1034, 2
        %s1036 = smul.addr %s1032, 32
        %s1037 = sadd.s32 %s1035, %s1036
        %s1038 = smul.addr %s1037, 8
        %s1039 = scalar_lea.vmem %s5, %s1038
      $region52: #{depthwise_separable_conv2d.1} parent=47 // pred_fallthru
        _
    $region48: #{depthwise_separable_conv2d.1} parent=5 // pred_fallthru
      _
  $region6: #{depthwise_separable_conv2d.1} parent=0 // loop_footer
    %s15 = sadd.s32 1, %s11
  $region7: #{depthwise_separable_conv2d.1} parent=0 // loop_footer_branch
    %10 = sbr.rel target = $region3
  $region8: #{depthwise_separable_conv2d.1} parent=0 // loop_exit
    _

</llo_original>
